<compile_context>
chip_gen: v6e
topology: v6e:2x2x1
jax: 0.10.0
libtpu: 0.0.40
codegen_flags: <defaults>
</compile_context>

<pallas_src>
import functools
import math

import jax
import jax.numpy as jnp
from jax.experimental import pallas as pl
from jax.experimental.pallas import tpu as pltpu


def _round_up(x, m):
    return ((x + m - 1) // m) * m


# --------------------------------------------------------------------------- #
# Kernels
# --------------------------------------------------------------------------- #

def _fused_block_kernel(x_ref,
                        w1_ref, b1_ref,
                        w2_ref, b2_ref,
                        ew1_ref, eb1_ref,
                        ew2_ref, eb2_ref,
                        o_ref):
    """experts.w2(experts.w1(bw2(bw1(x)))) on one f32 row tile.

    bf16 MXU operands, f32 accumulation, f32 bias adds. x is cast in-kernel.
    """
    x = x_ref[...].astype(jnp.bfloat16)                                   # (tm, Hp)
    h = jnp.dot(x, w1_ref[...], preferred_element_type=jnp.float32) + b1_ref[...]
    h = jnp.dot(h.astype(jnp.bfloat16), w2_ref[...],
                preferred_element_type=jnp.float32) + b2_ref[...]
    h = jnp.dot(h.astype(jnp.bfloat16), ew1_ref[...],
                preferred_element_type=jnp.float32) + eb1_ref[...]
    h = jnp.dot(h.astype(jnp.bfloat16), ew2_ref[...],
                preferred_element_type=jnp.float32) + eb2_ref[...]
    o_ref[...] = h.astype(o_ref.dtype)


def _two_linear_kernel(x_ref, wa_ref, ba_ref, wb_ref, bb_ref, o_ref):
    """wb(wa(x)) on one f32 row tile -- used twice when the fused call can't fit VMEM."""
    x = x_ref[...].astype(jnp.bfloat16)
    h = jnp.dot(x, wa_ref[...], preferred_element_type=jnp.float32) + ba_ref[...]
    h = jnp.dot(h.astype(jnp.bfloat16), wb_ref[...],
                preferred_element_type=jnp.float32) + bb_ref[...]
    o_ref[...] = h.astype(o_ref.dtype)


# --------------------------------------------------------------------------- #
# One-time capability / budget probes
# --------------------------------------------------------------------------- #

_BUFFERED1_OK = None


def _buffered1_supported():
    """Decide ONCE (AOT compile probe) whether pl.Buffered(1) single-buffering of
    constant-index weight blocks is accepted by this JAX/Mosaic build."""
    global _BUFFERED1_OK
    if _BUFFERED1_OK is not None:
        return _BUFFERED1_OK
    if not hasattr(pl, "Buffered"):
        _BUFFERED1_OK = False
        return False

    def _probe_kernel(x_ref, w_ref, o_ref):
        o_ref[...] = x_ref[...] + w_ref[...]

    try:
        fn = pl.pallas_call(
            _probe_kernel,
            out_shape=jax.ShapeDtypeStruct((16, 128), jnp.float32),
            grid=(2,),
            in_specs=[
                pl.BlockSpec((8, 128), lambda i: (i, 0)),
                pl.BlockSpec((8, 128), lambda i: (0, 0),
                             pipeline_mode=pl.Buffered(1)),
            ],
            out_specs=pl.BlockSpec((8, 128), lambda i: (i, 0)),
        )
        x = jnp.zeros((16, 128), jnp.float32)
        w = jnp.zeros((8, 128), jnp.float32)
        jax.jit(fn).lower(x, w).compile()
        _BUFFERED1_OK = True
    except Exception:
        _BUFFERED1_OK = False
    return _BUFFERED1_OK


def _vmem_capacity_bytes():
    """Generation-aware VMEM capacity (128 MiB on v5e/v6e, 64 MiB/TC on v7x)."""
    try:
        return int(pltpu.get_tpu_info().vmem_capacity_bytes)
    except Exception:
        return 64 * 1024 * 1024  # conservative fallback (v7x per-TensorCore)


# --------------------------------------------------------------------------- #
# VMEM planning
# --------------------------------------------------------------------------- #

def _act_vmem_bytes(tm, Hp, H2p):
    """Per-tile activation VMEM: double-buffered f32 x/out tiles plus the
    simultaneously-live f32 intermediate (tm, H2p) and its bf16 cast copies."""
    io = 2 * tm * Hp * 4 + 2 * tm * Hp * 4            # x in + out, double-buffered
    inter = 2 * tm * H2p * (4 + 2) + tm * Hp * (4 + 2)  # f32 h + bf16 copy hand-offs
    return io + inter


def _plan(Hp, H2p, capacity, single_buffer):
    """Return (tm_max, split, vmem_limit): largest row tile and whether to split the
    4-matmul fusion into two 2-matmul calls, given the resident-weight VMEM budget."""
    budget = max(32 << 20, capacity - (12 << 20))      # headroom for Mosaic scratch
    wmul = 1 if single_buffer else 2                   # weight buffering multiplier
    bias_bytes = 2 * (H2p + Hp) * 4
    fused_w = wmul * (4 * Hp * H2p * 2 + bias_bytes)   # 4 resident bf16 weights
    split_w = wmul * (2 * Hp * H2p * 2 + bias_bytes // 2)  # 2 resident bf16 weights
    for split, wbytes in ((False, fused_w), (True, split_w)):
        for tm in (512, 256, 128):
            if wbytes + _act_vmem_bytes(tm, Hp, H2p) <= budget:
                return tm, split, budget
    # Even two resident weights at tm=128 don't fit (very large H).
    # TODO(synk): stream weight K/N tiles from HBM (memory_space=pl.ANY +
    # pltpu.emit_pipeline into VMEM scratch) instead of relying on the split path.
    return 128, True, budget


def _choose_tm(M, tm_max):
    """Largest row tile in {512,256,128} <= tm_max that (a) fits the padded rows and
    (b) yields >= 2 grid tiles so the 'parallel' axis shards across v7x's two TCs."""
    Mp128 = _round_up(M, 128)
    for t in (512, 256, 128):
        if t <= tm_max and t <= Mp128 and (_round_up(M, t) // t) >= 2:
            return t
    return min(tm_max, 128)


# --------------------------------------------------------------------------- #
# pallas_call builders
# --------------------------------------------------------------------------- #

def _weight_spec(shape, single_buffer):
    # Constant-index (resident) blocks: one buffer suffices when supported.
    if single_buffer:
        return pl.BlockSpec(shape, lambda i: (0, 0), pipeline_mode=pl.Buffered(1))
    return pl.BlockSpec(shape, lambda i: (0, 0))


def _fused_call(Mp, Hp, H2p, tm, out_dtype, single_buffer, vmem_limit):
    wspec = lambda s: _weight_spec(s, single_buffer)
    flops = 4 * 2 * Mp * Hp * H2p
    bytes_accessed = (Mp * Hp * 4 * 2                    # f32 x in + f32 out
                      + 4 * Hp * H2p * 2                 # bf16 weights
                      + 2 * (H2p + Hp) * 4)              # f32 biases
    cost = pl.CostEstimate(flops=flops, transcendentals=0,
                           bytes_accessed=bytes_accessed)
    return pl.pallas_call(
        _fused_block_kernel,
        out_shape=jax.ShapeDtypeStruct((Mp, Hp), out_dtype),
        grid_spec=pltpu.PrefetchScalarGridSpec(
            num_scalar_prefetch=0,
            grid=(Mp // tm,),
            in_specs=[
                pl.BlockSpec((tm, Hp), lambda i: (i, 0)),   # x row tile (f32)
                wspec((Hp, H2p)), wspec((1, H2p)),          # bw1 w / b
                wspec((H2p, Hp)), wspec((1, Hp)),           # bw2 w / b
                wspec((Hp, H2p)), wspec((1, H2p)),          # experts.w1 w / b
                wspec((H2p, Hp)), wspec((1, Hp)),           # experts.w2 w / b
            ],
            out_specs=pl.BlockSpec((tm, Hp), lambda i: (i, 0)),
        ),
        compiler_params=pltpu.CompilerParams(
            dimension_semantics=("parallel",),
            vmem_limit_bytes=vmem_limit,
        ),
        cost_estimate=cost,
    )


def _two_linear_call(Mp, Hp, H2p, tm, out_dtype, single_buffer, vmem_limit):
    wspec = lambda s: _weight_spec(s, single_buffer)
    flops = 2 * 2 * Mp * Hp * H2p
    bytes_accessed = Mp * Hp * 4 * 2 + 2 * Hp * H2p * 2 + (H2p + Hp) * 4
    cost = pl.CostEstimate(flops=flops, transcendentals=0,
                           bytes_accessed=bytes_accessed)
    return pl.pallas_call(
        _two_linear_kernel,
        out_shape=jax.ShapeDtypeStruct((Mp, Hp), out_dtype),
        grid_spec=pltpu.PrefetchScalarGridSpec(
            num_scalar_prefetch=0,
            grid=(Mp // tm,),
            in_specs=[
                pl.BlockSpec((tm, Hp), lambda i: (i, 0)),
                wspec((Hp, H2p)), wspec((1, H2p)),
                wspec((H2p, Hp)), wspec((1, Hp)),
            ],
            out_specs=pl.BlockSpec((tm, Hp), lambda i: (i, 0)),
        ),
        compiler_params=pltpu.CompilerParams(
            dimension_semantics=("parallel",),
            vmem_limit_bytes=vmem_limit,
        ),
        cost_estimate=cost,
    )


# --------------------------------------------------------------------------- #
# Forward
# --------------------------------------------------------------------------- #

@functools.partial(jax.jit,
                   static_argnames=("Hp", "H2p", "tm_max", "split",
                                    "single_buffer", "vmem_limit"))
def _forward_impl(x2d, weights, *, Hp, H2p, tm_max, split, single_buffer, vmem_limit):
    M, H = x2d.shape
    tm = _choose_tm(M, tm_max)
    Mp = _round_up(M, tm)
    # x stays f32; in-kernel bf16 cast. Pad is fused by XLA under jit.
    xp = jnp.pad(x2d, ((0, Mp - M), (0, Hp - H)))
    w1, b1, w2, b2, ew1, eb1, ew2, eb2 = weights
    if not split:
        call = _fused_call(Mp, Hp, H2p, tm, jnp.float32, single_buffer, vmem_limit)
        yp = call(xp, w1, b1, w2, b2, ew1, eb1, ew2, eb2)
    else:
        # Two resident weights per call (halves weight VMEM on v7x at large H).
        call = _two_linear_call(Mp, Hp, H2p, tm, jnp.float32, single_buffer, vmem_limit)
        hp = call(xp, w1, b1, w2, b2)          # bw2(bw1(x)), stays padded f32
        yp = call(hp, ew1, eb1, ew2, eb2)      # experts.w2(experts.w1(.))
    # Output kept f32 to match torch.nn.Linear f32 semantics.
    return yp[:M, :H]


def prepare_dummy_block(params, hidden_size):
    """One-time parameter prep: pad hidden dims to multiples of 128, cast weights to
    bf16 (MXU operands), keep biases f32, and pick the VMEM plan for this chip."""
    H = hidden_size
    Hp = _round_up(H, 128)
    H2p = 2 * Hp

    single_buffer = _buffered1_supported()
    capacity = _vmem_capacity_bytes()
    tm_max, split, vmem_limit = _plan(Hp, H2p, capacity, single_buffer)

    def pad2(a, rows, cols, dtype):
        a = jnp.asarray(a, jnp.float32)
        return jnp.pad(a, ((0, rows - a.shape[0]), (0, cols - a.shape[1]))).astype(dtype)

    weights = (
        pad2(params["bw1_w"], Hp, H2p, jnp.bfloat16),
        pad2(params["bw1_b"], 1, H2p, jnp.float32),
        pad2(params["bw2_w"], H2p, Hp, jnp.bfloat16),
        pad2(params["bw2_b"], 1, Hp, jnp.float32),
        pad2(params["ew1_w"], Hp, H2p, jnp.bfloat16),
        pad2(params["ew1_b"], 1, H2p, jnp.float32),
        pad2(params["ew2_w"], H2p, Hp, jnp.bfloat16),
        pad2(params["ew2_b"], 1, Hp, jnp.float32),
    )
    return dict(weights=weights, H=H, Hp=Hp, H2p=H2p, tm_max=tm_max,
                split=split, single_buffer=single_buffer, vmem_limit=int(vmem_limit))


def dummy_block_forward(x2d, prepared):
    """x2d: [M, H] float32. prepared: output of prepare_dummy_block()."""
    return _forward_impl(
        x2d, prepared["weights"],
        Hp=prepared["Hp"], H2p=prepared["H2p"], tm_max=prepared["tm_max"],
        split=prepared["split"], single_buffer=prepared["single_buffer"],
        vmem_limit=prepared["vmem_limit"])


# --------------------------------------------------------------------------- #
# Parameter init (mimics torch.nn.Linear) + reference
# --------------------------------------------------------------------------- #

def init_linear(key, in_features, out_features):
    """torch.nn.Linear-style init (uniform +/- 1/sqrt(in)). Weight [in, out], bias [1, out]."""
    kw, kb = jax.random.split(key)
    bound = 1.0 / math.sqrt(in_features)
    w = jax.random.uniform(kw, (in_features, out_features), jnp.float32, -bound, bound)
    b = jax.random.uniform(kb, (1, out_features), jnp.float32, -bound, bound)
    return w, b


def make_params(key, hidden_size):
    k1, k2, k3, k4 = jax.random.split(key, 4)
    bw1_w, bw1_b = init_linear(k1, hidden_size, hidden_size * 2)
    bw2_w, bw2_b = init_linear(k2, hidden_size * 2, hidden_size)
    ew1_w, ew1_b = init_linear(k3, hidden_size, hidden_size * 2)
    ew2_w, ew2_b = init_linear(k4, hidden_size * 2, hidden_size)
    return dict(bw1_w=bw1_w, bw1_b=bw1_b, bw2_w=bw2_w, bw2_b=bw2_b,
                ew1_w=ew1_w, ew1_b=ew1_b, ew2_w=ew2_w, ew2_b=ew2_b)


def reference_forward(x2d, p):
    h = x2d @ p["bw1_w"] + p["bw1_b"]
    h = h @ p["bw2_w"] + p["bw2_b"]
    h = h @ p["ew1_w"] + p["ew1_b"]
    h = h @ p["ew2_w"] + p["ew2_b"]
    return h


if __name__ == "__main__":
    batch, seq, hidden = 2, 8, 32
    key = jax.random.PRNGKey(0)
    kx, kp = jax.random.split(key)

    x = jax.random.normal(kx, (batch, seq, hidden), jnp.float32)
    params = make_params(kp, hidden)
    prepared = prepare_dummy_block(params, hidden)   # one-time pad/cast + VMEM plan

    x2d = x.reshape(batch * seq, hidden)             # flatten leading dims (glue)
    out2d = dummy_block_forward(x2d, prepared)       # jitted, async dispatch
    out = out2d.reshape(batch, seq, hidden)
    jax.block_until_ready(out)

    ref = reference_forward(x2d, params).reshape(batch, seq, hidden)
    # bf16 MXU operands through 4 chained matmuls vs pure-f32 reference; error grows
    # roughly with sqrt(H) per matmul -- 5e-2 is ample at hidden=32.
    assert jnp.allclose(out, ref, atol=5e-2, rtol=5e-2), "mismatch vs pure-JAX reference"

    print("KERNEL_OK")
</pallas_src>

<mosaic_0001>
module attributes {stable_mosaic.version = 11 : i64} {
  func.func @_fused_block_kernel(%arg0: i32, %arg1: memref<128x128xf32, #tpu.memory_space<vmem>>, %arg2: memref<128x256xbf16, #tpu.memory_space<vmem>>, %arg3: memref<1x256xf32, #tpu.memory_space<vmem>>, %arg4: memref<256x128xbf16, #tpu.memory_space<vmem>>, %arg5: memref<1x128xf32, #tpu.memory_space<vmem>>, %arg6: memref<128x256xbf16, #tpu.memory_space<vmem>>, %arg7: memref<1x256xf32, #tpu.memory_space<vmem>>, %arg8: memref<256x128xbf16, #tpu.memory_space<vmem>>, %arg9: memref<1x128xf32, #tpu.memory_space<vmem>>, %arg10: memref<128x128xf32, #tpu.memory_space<vmem>>) attributes {dimension_semantics = [#tpu.dimension_semantics<parallel>], iteration_bounds = array<i64: 1>, scalar_prefetch = 0 : i64, scratch_operands = 0 : i64, tpu.core_type = #tpu.core_type<tc>, window_params = [{transform_indices = @transform_0, window_bounds = array<i64: 128, 128>}, {pipeline_mode = #tpu.pipeline_mode<synchronous>, transform_indices = @transform_1, window_bounds = array<i64: 128, 256>}, {pipeline_mode = #tpu.pipeline_mode<synchronous>, transform_indices = @transform_2, window_bounds = array<i64: 1, 256>}, {pipeline_mode = #tpu.pipeline_mode<synchronous>, transform_indices = @transform_3, window_bounds = array<i64: 256, 128>}, {pipeline_mode = #tpu.pipeline_mode<synchronous>, transform_indices = @transform_4, window_bounds = array<i64: 1, 128>}, {pipeline_mode = #tpu.pipeline_mode<synchronous>, transform_indices = @transform_5, window_bounds = array<i64: 128, 256>}, {pipeline_mode = #tpu.pipeline_mode<synchronous>, transform_indices = @transform_6, window_bounds = array<i64: 1, 256>}, {pipeline_mode = #tpu.pipeline_mode<synchronous>, transform_indices = @transform_7, window_bounds = array<i64: 256, 128>}, {pipeline_mode = #tpu.pipeline_mode<synchronous>, transform_indices = @transform_8, window_bounds = array<i64: 1, 128>}, {transform_indices = @transform_9, window_bounds = array<i64: 128, 128>}]} {
    %c0 = arith.constant 0 : index
    %c0_0 = arith.constant 0 : index
    %0 = vector.load %arg1[%c0, %c0_0] : memref<128x128xf32, #tpu.memory_space<vmem>>, vector<128x128xf32>
    %1 = arith.truncf %0 : vector<128x128xf32> to vector<128x128xbf16>
    %c0_1 = arith.constant 0 : index
    %c0_2 = arith.constant 0 : index
    %2 = vector.load %arg2[%c0_1, %c0_2] : memref<128x256xbf16, #tpu.memory_space<vmem>>, vector<128x256xbf16>
    %cst = arith.constant dense<0.000000e+00> : vector<128x256xf32>
    %3 = tpu.matmul %1, %2, %cst {dimension_numbers = #tpu.dot_dimension_numbers<[1], [0], [0], [1], [0, 0, 1, 1], [], []>} : vector<128x128xbf16>, vector<128x256xbf16>, vector<128x256xf32> -> vector<128x256xf32>
    %c0_3 = arith.constant 0 : index
    %c0_4 = arith.constant 0 : index
    %4 = vector.load %arg3[%c0_3, %c0_4] : memref<1x256xf32, #tpu.memory_space<vmem>>, vector<1x256xf32>
    %5 = vector.broadcast %4 : vector<1x256xf32> to vector<128x256xf32>
    %6 = arith.addf %3, %5 : vector<128x256xf32>
    %7 = arith.truncf %6 : vector<128x256xf32> to vector<128x256xbf16>
    %c0_5 = arith.constant 0 : index
    %c0_6 = arith.constant 0 : index
    %8 = vector.load %arg4[%c0_5, %c0_6] : memref<256x128xbf16, #tpu.memory_space<vmem>>, vector<256x128xbf16>
    %cst_7 = arith.constant dense<0.000000e+00> : vector<128x128xf32>
    %9 = tpu.matmul %7, %8, %cst_7 {dimension_numbers = #tpu.dot_dimension_numbers<[1], [0], [0], [1], [0, 0, 1, 1], [], []>} : vector<128x256xbf16>, vector<256x128xbf16>, vector<128x128xf32> -> vector<128x128xf32>
    %c0_8 = arith.constant 0 : index
    %c0_9 = arith.constant 0 : index
    %10 = vector.load %arg5[%c0_8, %c0_9] : memref<1x128xf32, #tpu.memory_space<vmem>>, vector<1x128xf32>
    %11 = vector.broadcast %10 : vector<1x128xf32> to vector<128x128xf32>
    %12 = arith.addf %9, %11 : vector<128x128xf32>
    %13 = arith.truncf %12 : vector<128x128xf32> to vector<128x128xbf16>
    %c0_10 = arith.constant 0 : index
    %c0_11 = arith.constant 0 : index
    %14 = vector.load %arg6[%c0_10, %c0_11] : memref<128x256xbf16, #tpu.memory_space<vmem>>, vector<128x256xbf16>
    %cst_12 = arith.constant dense<0.000000e+00> : vector<128x256xf32>
    %15 = tpu.matmul %13, %14, %cst_12 {dimension_numbers = #tpu.dot_dimension_numbers<[1], [0], [0], [1], [0, 0, 1, 1], [], []>} : vector<128x128xbf16>, vector<128x256xbf16>, vector<128x256xf32> -> vector<128x256xf32>
    %c0_13 = arith.constant 0 : index
    %c0_14 = arith.constant 0 : index
    %16 = vector.load %arg7[%c0_13, %c0_14] : memref<1x256xf32, #tpu.memory_space<vmem>>, vector<1x256xf32>
    %17 = vector.broadcast %16 : vector<1x256xf32> to vector<128x256xf32>
    %18 = arith.addf %15, %17 : vector<128x256xf32>
    %19 = arith.truncf %18 : vector<128x256xf32> to vector<128x256xbf16>
    %c0_15 = arith.constant 0 : index
    %c0_16 = arith.constant 0 : index
    %20 = vector.load %arg8[%c0_15, %c0_16] : memref<256x128xbf16, #tpu.memory_space<vmem>>, vector<256x128xbf16>
    %cst_17 = arith.constant dense<0.000000e+00> : vector<128x128xf32>
    %21 = tpu.matmul %19, %20, %cst_17 {dimension_numbers = #tpu.dot_dimension_numbers<[1], [0], [0], [1], [0, 0, 1, 1], [], []>} : vector<128x256xbf16>, vector<256x128xbf16>, vector<128x128xf32> -> vector<128x128xf32>
    %c0_18 = arith.constant 0 : index
    %c0_19 = arith.constant 0 : index
    %22 = vector.load %arg9[%c0_18, %c0_19] : memref<1x128xf32, #tpu.memory_space<vmem>>, vector<1x128xf32>
    %23 = vector.broadcast %22 : vector<1x128xf32> to vector<128x128xf32>
    %24 = arith.addf %21, %23 : vector<128x128xf32>
    %c0_20 = arith.constant 0 : index
    %c0_21 = arith.constant 0 : index
    %25 = vector.load %arg10[%c0_20, %c0_21] : memref<128x128xf32, #tpu.memory_space<vmem>>, vector<128x128xf32>
    tpu.vector_store %arg10[%c0_20, %c0_21], %24 {strides = array<i32>} : memref<128x128xf32, #tpu.memory_space<vmem>>, vector<128x128xf32>,
    return
  }
  func.func @transform_0(%arg0: i32) -> (i32, i32) {
    %c0_i32 = arith.constant 0 : i32
    %c0_i32_0 = arith.constant 0 : i32
    return %arg0, %c0_i32 : i32, i32
  }
  func.func @transform_1(%arg0: i32) -> (i32, i32) {
    %c0_i32 = arith.constant 0 : i32
    %c0_i32_0 = arith.constant 0 : i32
    %c0_i32_1 = arith.constant 0 : i32
    return %c0_i32, %c0_i32_0 : i32, i32
  }
  func.func @transform_2(%arg0: i32) -> (i32, i32) {
    %c0_i32 = arith.constant 0 : i32
    %c0_i32_0 = arith.constant 0 : i32
    %c0_i32_1 = arith.constant 0 : i32
    return %c0_i32, %c0_i32_0 : i32, i32
  }
  func.func @transform_3(%arg0: i32) -> (i32, i32) {
    %c0_i32 = arith.constant 0 : i32
    %c0_i32_0 = arith.constant 0 : i32
    %c0_i32_1 = arith.constant 0 : i32
    return %c0_i32, %c0_i32_0 : i32, i32
  }
  func.func @transform_4(%arg0: i32) -> (i32, i32) {
    %c0_i32 = arith.constant 0 : i32
    %c0_i32_0 = arith.constant 0 : i32
    %c0_i32_1 = arith.constant 0 : i32
    return %c0_i32, %c0_i32_0 : i32, i32
  }
  func.func @transform_5(%arg0: i32) -> (i32, i32) {
    %c0_i32 = arith.constant 0 : i32
    %c0_i32_0 = arith.constant 0 : i32
    %c0_i32_1 = arith.constant 0 : i32
    return %c0_i32, %c0_i32_0 : i32, i32
  }
  func.func @transform_6(%arg0: i32) -> (i32, i32) {
    %c0_i32 = arith.constant 0 : i32
    %c0_i32_0 = arith.constant 0 : i32
    %c0_i32_1 = arith.constant 0 : i32
    return %c0_i32, %c0_i32_0 : i32, i32
  }
  func.func @transform_7(%arg0: i32) -> (i32, i32) {
    %c0_i32 = arith.constant 0 : i32
    %c0_i32_0 = arith.constant 0 : i32
    %c0_i32_1 = arith.constant 0 : i32
    return %c0_i32, %c0_i32_0 : i32, i32
  }
  func.func @transform_8(%arg0: i32) -> (i32, i32) {
    %c0_i32 = arith.constant 0 : i32
    %c0_i32_0 = arith.constant 0 : i32
    %c0_i32_1 = arith.constant 0 : i32
    return %c0_i32, %c0_i32_0 : i32, i32
  }
  func.func @transform_9(%arg0: i32) -> (i32, i32) {
    %c0_i32 = arith.constant 0 : i32
    %c0_i32_0 = arith.constant 0 : i32
    return %arg0, %c0_i32 : i32, i32
  }
}

</mosaic_0001>

<llo_original>
// kernel: _forward_impl.1
$region0: #{_forward_impl.1}
  #allocation0 [shape = 'u32[]', space=smem, size = 0x4, offset = 0x4, fixed_abs, tag = 'smem constant byte address 0x4 - core index']
  #allocation1 [shape = 'u32[144,128]{1,0:T(1,128)}', space=vmem, size = 0x12000, scoped, tag = 'internal scratch']
  %s0 = inlined_call_operand.vmem [shape: f32[128,128], index: 0, kind: input, shape index: {}]
  %s1 = inlined_call_operand.vmem [shape: bf16[128,256], index: 1, kind: input, shape index: {}]
  %s2 = inlined_call_operand.vmem [shape: f32[1,256], index: 2, kind: input, shape index: {}]
  %s3 = inlined_call_operand.hbm [shape: bf16[256,128], index: 3, kind: input, shape index: {}]
  %s4 = inlined_call_operand.vmem [shape: f32[1,128], index: 4, kind: input, shape index: {}]
  %s5 = inlined_call_operand.hbm [shape: bf16[128,256], index: 5, kind: input, shape index: {}]
  %s6 = inlined_call_operand.vmem [shape: f32[1,256], index: 6, kind: input, shape index: {}]
  %s7 = inlined_call_operand.hbm [shape: bf16[256,128], index: 7, kind: input, shape index: {}]
  %s8 = inlined_call_operand.vmem [shape: f32[1,128], index: 8, kind: input, shape index: {}]
  %s9 = inlined_call_operand.vmem [shape: f32[128,128], index: 9, kind: output, shape index: {}]
  %s10 = sld [smem:[#allocation0]]
  $region58: #{_forward_impl.1} parent=0
    _
  %s12 = ssub.s32 1, %s10
  %s13 = scalar_select 0, %s12, %s10
  $region1: #{_forward_impl.1} parent=0
    #allocation2 [shape = 'u8[65536]{0}', space=vmem, size = 0x10000, scoped, tag = 'input window, operand 3, single buffered']
    #allocation3 [shape = 's32[1]{0}', space=sflag, size = 0x4, scoped, tag = 'scoped memory for _forward_impl.1']
    #allocation4 [shape = 'u8[65536]{0}', space=vmem, size = 0x10000, scoped, tag = 'input window, operand 5, single buffered']
    #allocation5 [shape = 's32[1]{0}', space=sflag, size = 0x4, scoped, tag = 'scoped memory for _forward_impl.1']
    #allocation6 [shape = 'u8[65536]{0}', space=vmem, size = 0x10000, scoped, tag = 'input window, operand 7, single buffered']
    %14 = vsyncpa [#allocation3], 0
    %15 = vsyncpa [#allocation5], 0
    // Predicated region
    $region2: #{_forward_impl.1} parent=1 // pred_check
      _
    $region3: #{_forward_impl.1} parent=1 // pred_check_branch
      %17 = sbr.rel (0) target = $region5
    $region4: #{_forward_impl.1} parent=1 // pred_region
      _
    $region5: #{_forward_impl.1} parent=1 // pred_fallthru
      _
    // Predicated region
    $region6: #{_forward_impl.1} parent=1 // pred_check
      _
    $region7: #{_forward_impl.1} parent=1 // pred_check_branch
      %19 = sbr.rel (0) target = $region9
    $region8: #{_forward_impl.1} parent=1 // pred_region
      _
    $region9: #{_forward_impl.1} parent=1 // pred_fallthru
      _
    // Predicated region
    $region10: #{_forward_impl.1} parent=1 // pred_check
      _
    $region11: #{_forward_impl.1} parent=1 // pred_check_branch
      %21 = sbr.rel (0) target = $region13
    $region12: #{_forward_impl.1} parent=1 // pred_region
      _
    $region13: #{_forward_impl.1} parent=1 // pred_fallthru
      _
    // Predicated region
    $region14: #{_forward_impl.1} parent=1 // pred_check
      _
    $region15: #{_forward_impl.1} parent=1 // pred_check_branch
      %23 = sbr.rel (0) target = $region17
    $region16: #{_forward_impl.1} parent=1 // pred_region
      %s25 = ssub.s32 2048, 2048
      %26 = vsyncadd [#allocation3], %s25
      %s27 = sshll.u32 [#allocation2], 4
      %s28 = int_to_ptr.vmem [resolvable:$true] %s27
      %33 = dma.hbm_to_vmem [thread:$0]  %s3, 2048, %s28, [#allocation3], 64, 64, 4
    $region17: #{_forward_impl.1} parent=1 // pred_fallthru
      _
    // Predicated region
    $region18: #{_forward_impl.1} parent=1 // pred_check
      _
    $region19: #{_forward_impl.1} parent=1 // pred_check_branch
      %35 = sbr.rel (0) target = $region21
    $region20: #{_forward_impl.1} parent=1 // pred_region
      _
    $region21: #{_forward_impl.1} parent=1 // pred_fallthru
      _
    // Predicated region
    $region22: #{_forward_impl.1} parent=1 // pred_check
      _
    $region23: #{_forward_impl.1} parent=1 // pred_check_branch
      %37 = sbr.rel (0) target = $region25
    $region24: #{_forward_impl.1} parent=1 // pred_region
      %s39 = ssub.s32 2048, 2048
      %40 = vsyncadd [#allocation5], %s39
      %s41 = sshll.u32 [#allocation4], 4
      %s42 = int_to_ptr.vmem [resolvable:$true] %s41
      %47 = dma.hbm_to_vmem [thread:$0]  %s5, 2048, %s42, [#allocation5], 128, 128, 8
    $region25: #{_forward_impl.1} parent=1 // pred_fallthru
      _
    // Predicated region
    $region26: #{_forward_impl.1} parent=1 // pred_check
      _
    $region27: #{_forward_impl.1} parent=1 // pred_check_branch
      %49 = sbr.rel (0) target = $region29
    $region28: #{_forward_impl.1} parent=1 // pred_region
      _
    $region29: #{_forward_impl.1} parent=1 // pred_fallthru
      _
    // Predicated region
    $region30: #{_forward_impl.1} parent=1 // pred_check
      _
    $region31: #{_forward_impl.1} parent=1 // pred_check_branch
      %51 = sbr.rel (0) target = $region33
    $region32: #{_forward_impl.1} parent=1 // pred_region
      %s53 = ssub.s32 2048, 2048
      %54 = vsyncadd [#allocation5], %s53
      %s55 = sshll.u32 [#allocation6], 4
      %s56 = int_to_ptr.vmem [resolvable:$true] %s55
      %61 = dma.hbm_to_vmem [thread:$0]  %s7, 2048, %s56, [#allocation5], 64, 64, 4
    $region33: #{_forward_impl.1} parent=1 // pred_fallthru
      _
    // Predicated region
    $region34: #{_forward_impl.1} parent=1 // pred_check
      _
    $region35: #{_forward_impl.1} parent=1 // pred_check_branch
      %63 = sbr.rel (0) target = $region37
    $region36: #{_forward_impl.1} parent=1 // pred_region
      _
    $region37: #{_forward_impl.1} parent=1 // pred_fallthru
      _
    // Predicated region
    $region38: #{_forward_impl.1} parent=1 // pred_check
      _
    $region39: #{_forward_impl.1} parent=1 // pred_check_branch
      %65 = sbr.rel (0) target = $region41
    $region40: #{_forward_impl.1} parent=1 // pred_region
      %66 = dma.done [#allocation3], 2048
    $region41: #{_forward_impl.1} parent=1 // pred_fallthru
      _
    // Predicated region
    $region42: #{_forward_impl.1} parent=1 // pred_check
      _
    $region43: #{_forward_impl.1} parent=1 // pred_check_branch
      %68 = sbr.rel (0) target = $region45
    $region44: #{_forward_impl.1} parent=1 // pred_region
      %69 = dma.done [#allocation5], 2048
    $region45: #{_forward_impl.1} parent=1 // pred_fallthru
      _
    // Predicated region
    $region46: #{_forward_impl.1} parent=1 // pred_check
      _
    $region47: #{_forward_impl.1} parent=1 // pred_check_branch
      %71 = sbr.rel (0) target = $region49
    $region48: #{_forward_impl.1} parent=1 // pred_region
      %72 = dma.done [#allocation5], 2048
    $region49: #{_forward_impl.1} parent=1 // pred_fallthru
      _
    %v74 = vld [vmem:[%s0] sm:$0xff]
    %v75 = vld [vmem:[%s0 + $0x8] sm:$0xff]
    %v76 = vld [vmem:[%s0 + $0x10] sm:$0xff]
    %v77 = vld [vmem:[%s0 + $0x18] sm:$0xff]
    %v78 = vld [vmem:[%s0 + $0x20] sm:$0xff]
    %v79 = vld [vmem:[%s0 + $0x28] sm:$0xff]
    %v80 = vld [vmem:[%s0 + $0x30] sm:$0xff]
    %v81 = vld [vmem:[%s0 + $0x38] sm:$0xff]
    %v82 = vld [vmem:[%s0 + $0x40] sm:$0xff]
    %v83 = vld [vmem:[%s0 + $0x48] sm:$0xff]
    %v84 = vld [vmem:[%s0 + $0x50] sm:$0xff]
    %v85 = vld [vmem:[%s0 + $0x58] sm:$0xff]
    %v86 = vld [vmem:[%s0 + $0x60] sm:$0xff]
    %v87 = vld [vmem:[%s0 + $0x68] sm:$0xff]
    %v88 = vld [vmem:[%s0 + $0x70] sm:$0xff]
    %v89 = vld [vmem:[%s0 + $0x78] sm:$0xff]
    %v90 = vpack.c.bf16 %v75, %v74
    %v91 = vpack.c.bf16 %v77, %v76
    %v92 = vpack.c.bf16 %v79, %v78
    %v93 = vpack.c.bf16 %v81, %v80
    %v94 = vpack.c.bf16 %v83, %v82
    %v95 = vpack.c.bf16 %v85, %v84
    %v96 = vpack.c.bf16 %v87, %v86
    %v97 = vpack.c.bf16 %v89, %v88
    %v98 = vld [vmem:[%s1] sm:$0xff]
    %v99 = vld [vmem:[%s1 + $0x8] sm:$0xff]
    %v100 = vld [vmem:[%s1 + $0x10] sm:$0xff]
    %v101 = vld [vmem:[%s1 + $0x18] sm:$0xff]
    %v102 = vld [vmem:[%s1 + $0x20] sm:$0xff]
    %v103 = vld [vmem:[%s1 + $0x28] sm:$0xff]
    %v104 = vld [vmem:[%s1 + $0x30] sm:$0xff]
    %v105 = vld [vmem:[%s1 + $0x38] sm:$0xff]
    %v106 = vld [vmem:[%s1 + $0x40] sm:$0xff]
    %v107 = vld [vmem:[%s1 + $0x48] sm:$0xff]
    %v108 = vld [vmem:[%s1 + $0x50] sm:$0xff]
    %v109 = vld [vmem:[%s1 + $0x58] sm:$0xff]
    %v110 = vld [vmem:[%s1 + $0x60] sm:$0xff]
    %v111 = vld [vmem:[%s1 + $0x68] sm:$0xff]
    %v112 = vld [vmem:[%s1 + $0x70] sm:$0xff]
    %v113 = vld [vmem:[%s1 + $0x78] sm:$0xff]
    %v114 = vld [vmem:[%s2] sm:$0x3]
    %v116 = vlaneseq
    %v117 = vshrl.u32 %v116, 7
    %v118 = vsub.s32 0, %v117
    %v119 = vrot.slane %v114, %v118
    %v120 = vlaneseq
    %v121 = vshrl.u32 %v120, 7
    %v122 = vsub.s32 1, %v121
    %v123 = vrot.slane %v114, %v122
    %v142 = vunpack.c.l.b16 %v98
    %v143 = vunpack.c.h.b16 %v98
    %v144 = vunpack.c.l.b16 %v99
    %v145 = vunpack.c.h.b16 %v99
    %v146 = vunpack.c.l.b16 %v100
    %v147 = vunpack.c.h.b16 %v100
    %v148 = vunpack.c.l.b16 %v101
    %v149 = vunpack.c.h.b16 %v101
    %v150 = vunpack.c.l.b16 %v102
    %v151 = vunpack.c.h.b16 %v102
    %v152 = vunpack.c.l.b16 %v103
    %v153 = vunpack.c.h.b16 %v103
    %v154 = vunpack.c.l.b16 %v104
    %v155 = vunpack.c.h.b16 %v104
    %v156 = vunpack.c.l.b16 %v105
    %v157 = vunpack.c.h.b16 %v105
    %v158 = vunpack.c.l.b16 %v106
    %v159 = vunpack.c.h.b16 %v106
    %v160 = vunpack.c.l.b16 %v107
    %v161 = vunpack.c.h.b16 %v107
    %v162 = vunpack.c.l.b16 %v108
    %v163 = vunpack.c.h.b16 %v108
    %v164 = vunpack.c.l.b16 %v109
    %v165 = vunpack.c.h.b16 %v109
    %v166 = vunpack.c.l.b16 %v110
    %v167 = vunpack.c.h.b16 %v110
    %v168 = vunpack.c.l.b16 %v111
    %v169 = vunpack.c.h.b16 %v111
    %v170 = vunpack.c.l.b16 %v112
    %v171 = vunpack.c.h.b16 %v112
    %v172 = vunpack.c.l.b16 %v113
    %v173 = vunpack.c.h.b16 %v113
    %v174 = vpack.c.b16 %v144, %v142
    %v175 = vpack.c.b16 %v145, %v143
    %v176 = vpack.c.b16 %v148, %v146
    %v177 = vpack.c.b16 %v149, %v147
    %v178 = vpack.c.b16 %v152, %v150
    %v179 = vpack.c.b16 %v153, %v151
    %v180 = vpack.c.b16 %v156, %v154
    %v181 = vpack.c.b16 %v157, %v155
    %v182 = vpack.c.b16 %v160, %v158
    %v183 = vpack.c.b16 %v161, %v159
    %v184 = vpack.c.b16 %v164, %v162
    %v185 = vpack.c.b16 %v165, %v163
    %v186 = vpack.c.b16 %v168, %v166
    %v187 = vpack.c.b16 %v169, %v167
    %v188 = vpack.c.b16 %v172, %v170
    %v189 = vpack.c.b16 %v173, %v171
    %206 = vmatprep.subr.bf16.mxu0 %v189
    %207 = vmatpush1.bf16.msra.mxu0 %v188
    %208 = vmatprep.subr.bf16.mxu0 %v187
    %209 = vmatpush1.bf16.msra.mxu0 %v186
    %210 = vmatprep.subr.bf16.mxu0 %v185
    %211 = vmatpush1.bf16.msra.mxu0 %v184
    %212 = vmatprep.subr.bf16.mxu0 %v183
    %213 = vmatpush1.bf16.msra.mxu0 %v182
    %214 = vmatprep.subr.bf16.mxu0 %v181
    %215 = vmatpush1.bf16.msra.mxu0 %v180
    %216 = vmatprep.subr.bf16.mxu0 %v179
    %217 = vmatpush1.bf16.msra.mxu0 %v178
    %218 = vmatprep.subr.bf16.mxu0 %v177
    %219 = vmatpush1.bf16.msra.mxu0 %v176
    %220 = vmatprep.subr.bf16.mxu0 %v175
    %221 = vmatpush1.bf16.msra.mxu0 %v174
    %222 = vmatprep.subr.bf16.mxu0 0
    %223 = vmatpush2.bf16.msra.mxu0 0
    %224 = vmatprep.subr.bf16.mxu0 0
    %225 = vmatpush2.bf16.msra.mxu0 0
    %226 = vmatprep.subr.bf16.mxu0 0
    %227 = vmatpush2.bf16.msra.mxu0 0
    %228 = vmatprep.subr.bf16.mxu0 0
    %229 = vmatpush2.bf16.msra.mxu0 0
    %230 = vmatprep.subr.bf16.mxu0 0
    %231 = vmatpush2.bf16.msra.mxu0 0
    %232 = vmatprep.subr.bf16.mxu0 0
    %233 = vmatpush2.bf16.msra.mxu0 0
    %234 = vmatprep.subr.bf16.mxu0 0
    %235 = vmatpush2.bf16.msra.mxu0 0
    %236 = vmatprep.subr.bf16.mxu0 0
    %237 = vmatpush2.bf16.msra.mxu0 0
    %238 = vmatprep.mubr.bf16.mxu0 0
    %239 = vmatmul.mubr.bf16.gmra.mxu0 %v90
    %v240 = vpop.f32.mrf.mxu0
    %v241 = vadd.f32 %v119, %v240
    %v242 = vpop.f32.mrf.mxu0
    %v243 = vadd.f32 %v123, %v242
    %v244 = vpop.f32.mrf.mxu0
    %v245 = vadd.f32 %v119, %v244
    %v246 = vpop.f32.mrf.mxu0
    %v247 = vadd.f32 %v123, %v246
    %248 = vmatprep.mubr.bf16.mxu0 0
    %249 = vmatmul.mubr.bf16.gmra.mxu0 %v91
    %v250 = vpop.f32.mrf.mxu0
    %v251 = vadd.f32 %v119, %v250
    %v252 = vpop.f32.mrf.mxu0
    %v253 = vadd.f32 %v123, %v252
    %v254 = vpop.f32.mrf.mxu0
    %v255 = vadd.f32 %v119, %v254
    %v256 = vpop.f32.mrf.mxu0
    %v257 = vadd.f32 %v123, %v256
    %258 = vmatprep.mubr.bf16.mxu0 0
    %259 = vmatmul.mubr.bf16.gmra.mxu0 %v92
    %v260 = vpop.f32.mrf.mxu0
    %v261 = vadd.f32 %v119, %v260
    %v262 = vpop.f32.mrf.mxu0
    %v263 = vadd.f32 %v123, %v262
    %v264 = vpop.f32.mrf.mxu0
    %v265 = vadd.f32 %v119, %v264
    %v266 = vpop.f32.mrf.mxu0
    %v267 = vadd.f32 %v123, %v266
    %268 = vmatprep.mubr.bf16.mxu0 0
    %269 = vmatmul.mubr.bf16.gmra.mxu0 %v93
    %v270 = vpop.f32.mrf.mxu0
    %v271 = vadd.f32 %v119, %v270
    %v272 = vpop.f32.mrf.mxu0
    %v273 = vadd.f32 %v123, %v272
    %v274 = vpop.f32.mrf.mxu0
    %v275 = vadd.f32 %v119, %v274
    %v276 = vpop.f32.mrf.mxu0
    %v277 = vadd.f32 %v123, %v276
    %278 = vmatprep.mubr.bf16.mxu0 0
    %279 = vmatmul.mubr.bf16.gmra.mxu0 %v94
    %v280 = vpop.f32.mrf.mxu0
    %v281 = vadd.f32 %v119, %v280
    %v282 = vpop.f32.mrf.mxu0
    %v283 = vadd.f32 %v123, %v282
    %v284 = vpop.f32.mrf.mxu0
    %v285 = vadd.f32 %v119, %v284
    %v286 = vpop.f32.mrf.mxu0
    %v287 = vadd.f32 %v123, %v286
    %288 = vmatprep.mubr.bf16.mxu0 0
    %289 = vmatmul.mubr.bf16.gmra.mxu0 %v95
    %v290 = vpop.f32.mrf.mxu0
    %v291 = vadd.f32 %v119, %v290
    %v292 = vpop.f32.mrf.mxu0
    %v293 = vadd.f32 %v123, %v292
    %v294 = vpop.f32.mrf.mxu0
    %v295 = vadd.f32 %v119, %v294
    %v296 = vpop.f32.mrf.mxu0
    %v297 = vadd.f32 %v123, %v296
    %298 = vmatprep.mubr.bf16.mxu0 0
    %299 = vmatmul.mubr.bf16.gmra.mxu0 %v96
    %v300 = vpop.f32.mrf.mxu0
    %v301 = vadd.f32 %v119, %v300
    %v302 = vpop.f32.mrf.mxu0
    %v303 = vadd.f32 %v123, %v302
    %v304 = vpop.f32.mrf.mxu0
    %v305 = vadd.f32 %v119, %v304
    %v306 = vpop.f32.mrf.mxu0
    %v307 = vadd.f32 %v123, %v306
    %308 = vmatprep.mubr.bf16.mxu0 0
    %309 = vmatmul.mubr.bf16.gmra.mxu0 %v97
    %v310 = vpop.f32.mrf.mxu0
    %v311 = vadd.f32 %v119, %v310
    %v312 = vpop.f32.mrf.mxu0
    %v313 = vadd.f32 %v123, %v312
    %v314 = vpop.f32.mrf.mxu0
    %v315 = vadd.f32 %v119, %v314
    %v316 = vpop.f32.mrf.mxu0
    %v317 = vadd.f32 %v123, %v316
    %318 = vdwg.mxu0
    %v319 = vpack.c.bf16 %v245, %v241
    %v320 = vpack.c.bf16 %v247, %v243
    %v321 = vpack.c.bf16 %v255, %v251
    %v322 = vpack.c.bf16 %v257, %v253
    %v323 = vpack.c.bf16 %v265, %v261
    %v324 = vpack.c.bf16 %v267, %v263
    %v325 = vpack.c.bf16 %v275, %v271
    %v326 = vpack.c.bf16 %v277, %v273
    %v327 = vpack.c.bf16 %v285, %v281
    %v328 = vpack.c.bf16 %v287, %v283
    %v329 = vpack.c.bf16 %v295, %v291
    %v330 = vpack.c.bf16 %v297, %v293
    %v331 = vpack.c.bf16 %v305, %v301
    %v332 = vpack.c.bf16 %v307, %v303
    %v333 = vpack.c.bf16 %v315, %v311
    %v334 = vpack.c.bf16 %v317, %v313
    %v335 = vld [vmem:[#allocation2] sm:$0xf]
    %v336 = vld [vmem:[#allocation2 + $0x4] sm:$0xf]
    %v337 = vld [vmem:[#allocation2 + $0x8] sm:$0xf]
    %v338 = vld [vmem:[#allocation2 + $0xc] sm:$0xf]
    %v339 = vld [vmem:[#allocation2 + $0x10] sm:$0xf]
    %v340 = vld [vmem:[#allocation2 + $0x14] sm:$0xf]
    %v341 = vld [vmem:[#allocation2 + $0x18] sm:$0xf]
    %v342 = vld [vmem:[#allocation2 + $0x1c] sm:$0xf]
    %v343 = vld [vmem:[#allocation2 + $0x20] sm:$0xf]
    %v344 = vld [vmem:[#allocation2 + $0x24] sm:$0xf]
    %v345 = vld [vmem:[#allocation2 + $0x28] sm:$0xf]
    %v346 = vld [vmem:[#allocation2 + $0x2c] sm:$0xf]
    %v347 = vld [vmem:[#allocation2 + $0x30] sm:$0xf]
    %v348 = vld [vmem:[#allocation2 + $0x34] sm:$0xf]
    %v349 = vld [vmem:[#allocation2 + $0x38] sm:$0xf]
    %v350 = vld [vmem:[#allocation2 + $0x3c] sm:$0xf]
    %v351 = vld [vmem:[#allocation2 + $0x40] sm:$0xf]
    %v352 = vld [vmem:[#allocation2 + $0x44] sm:$0xf]
    %v353 = vld [vmem:[#allocation2 + $0x48] sm:$0xf]
    %v354 = vld [vmem:[#allocation2 + $0x4c] sm:$0xf]
    %v355 = vld [vmem:[#allocation2 + $0x50] sm:$0xf]
    %v356 = vld [vmem:[#allocation2 + $0x54] sm:$0xf]
    %v357 = vld [vmem:[#allocation2 + $0x58] sm:$0xf]
    %v358 = vld [vmem:[#allocation2 + $0x5c] sm:$0xf]
    %v359 = vld [vmem:[#allocation2 + $0x60] sm:$0xf]
    %v360 = vld [vmem:[#allocation2 + $0x64] sm:$0xf]
    %v361 = vld [vmem:[#allocation2 + $0x68] sm:$0xf]
    %v362 = vld [vmem:[#allocation2 + $0x6c] sm:$0xf]
    %v363 = vld [vmem:[#allocation2 + $0x70] sm:$0xf]
    %v364 = vld [vmem:[#allocation2 + $0x74] sm:$0xf]
    %v365 = vld [vmem:[#allocation2 + $0x78] sm:$0xf]
    %v366 = vld [vmem:[#allocation2 + $0x7c] sm:$0xf]
    %v367 = vld [vmem:[%s4] sm:$0x1]
    %v369 = vlaneseq
    %v370 = vshrl.u32 %v369, 7
    %v371 = vsub.s32 0, %v370
    %v372 = vrot.slane %v367, %v371
    %v406 = vunpack.c.l.b16 %v335
    %v407 = vunpack.c.l.b16 %v336
    %v408 = vunpack.c.l.b16 %v337
    %v409 = vunpack.c.l.b16 %v338
    %v410 = vunpack.c.l.b16 %v339
    %v411 = vunpack.c.l.b16 %v340
    %v412 = vunpack.c.l.b16 %v341
    %v413 = vunpack.c.l.b16 %v342
    %v414 = vunpack.c.l.b16 %v343
    %v415 = vunpack.c.l.b16 %v344
    %v416 = vunpack.c.l.b16 %v345
    %v417 = vunpack.c.l.b16 %v346
    %v418 = vunpack.c.l.b16 %v347
    %v419 = vunpack.c.l.b16 %v348
    %v420 = vunpack.c.l.b16 %v349
    %v421 = vunpack.c.l.b16 %v350
    %v422 = vunpack.c.l.b16 %v351
    %v423 = vunpack.c.l.b16 %v352
    %v424 = vunpack.c.l.b16 %v353
    %v425 = vunpack.c.l.b16 %v354
    %v426 = vunpack.c.l.b16 %v355
    %v427 = vunpack.c.l.b16 %v356
    %v428 = vunpack.c.l.b16 %v357
    %v429 = vunpack.c.l.b16 %v358
    %v430 = vunpack.c.l.b16 %v359
    %v431 = vunpack.c.l.b16 %v360
    %v432 = vunpack.c.l.b16 %v361
    %v433 = vunpack.c.l.b16 %v362
    %v434 = vunpack.c.l.b16 %v363
    %v435 = vunpack.c.l.b16 %v364
    %v436 = vunpack.c.l.b16 %v365
    %v437 = vunpack.c.l.b16 %v366
    %v438 = vpack.c.b16 %v407, %v406
    %v439 = vpack.c.b16 %v409, %v408
    %v440 = vpack.c.b16 %v411, %v410
    %v441 = vpack.c.b16 %v413, %v412
    %v442 = vpack.c.b16 %v415, %v414
    %v443 = vpack.c.b16 %v417, %v416
    %v444 = vpack.c.b16 %v419, %v418
    %v445 = vpack.c.b16 %v421, %v420
    %v446 = vpack.c.b16 %v423, %v422
    %v447 = vpack.c.b16 %v425, %v424
    %v448 = vpack.c.b16 %v427, %v426
    %v449 = vpack.c.b16 %v429, %v428
    %v450 = vpack.c.b16 %v431, %v430
    %v451 = vpack.c.b16 %v433, %v432
    %v452 = vpack.c.b16 %v435, %v434
    %v453 = vpack.c.b16 %v437, %v436
    %470 = vmatprep.subr.bf16.mxu0 0
    %471 = vmatpush1.bf16.msra.mxu0 %v445
    %472 = vmatprep.subr.bf16.mxu0 0
    %473 = vmatpush1.bf16.msra.mxu0 %v444
    %474 = vmatprep.subr.bf16.mxu0 0
    %475 = vmatpush1.bf16.msra.mxu0 %v443
    %476 = vmatprep.subr.bf16.mxu0 0
    %477 = vmatpush1.bf16.msra.mxu0 %v442
    %478 = vmatprep.subr.bf16.mxu0 0
    %479 = vmatpush1.bf16.msra.mxu0 %v441
    %480 = vmatprep.subr.bf16.mxu0 0
    %481 = vmatpush1.bf16.msra.mxu0 %v440
    %482 = vmatprep.subr.bf16.mxu0 0
    %483 = vmatpush1.bf16.msra.mxu0 %v439
    %484 = vmatprep.subr.bf16.mxu0 0
    %485 = vmatpush1.bf16.msra.mxu0 %v438
    %486 = vmatprep.subr.bf16.mxu0 0
    %487 = vmatpush2.bf16.msra.mxu0 %v453
    %488 = vmatprep.subr.bf16.mxu0 0
    %489 = vmatpush2.bf16.msra.mxu0 %v452
    %490 = vmatprep.subr.bf16.mxu0 0
    %491 = vmatpush2.bf16.msra.mxu0 %v451
    %492 = vmatprep.subr.bf16.mxu0 0
    %493 = vmatpush2.bf16.msra.mxu0 %v450
    %494 = vmatprep.subr.bf16.mxu0 0
    %495 = vmatpush2.bf16.msra.mxu0 %v449
    %496 = vmatprep.subr.bf16.mxu0 0
    %497 = vmatpush2.bf16.msra.mxu0 %v448
    %498 = vmatprep.subr.bf16.mxu0 0
    %499 = vmatpush2.bf16.msra.mxu0 %v447
    %500 = vmatprep.subr.bf16.mxu0 0
    %501 = vmatpush2.bf16.msra.mxu0 %v446
    %502 = vmatprep.mubr.bf16.mxu0 %v320
    %503 = vmatmul.mubr.bf16.gmra.mxu0 %v319
    %v504 = vpop.f32.mrf.mxu0
    %v505 = vadd.f32 %v372, %v504
    %v506 = vpop.f32.mrf.mxu0
    %v507 = vpop.f32.mrf.mxu0
    %v508 = vadd.f32 %v372, %v507
    %v509 = vpop.f32.mrf.mxu0
    %510 = vmatprep.mubr.bf16.mxu0 %v322
    %511 = vmatmul.mubr.bf16.gmra.mxu0 %v321
    %v512 = vpop.f32.mrf.mxu0
    %v513 = vadd.f32 %v372, %v512
    %v514 = vpop.f32.mrf.mxu0
    %v515 = vpop.f32.mrf.mxu0
    %v516 = vadd.f32 %v372, %v515
    %v517 = vpop.f32.mrf.mxu0
    %518 = vmatprep.mubr.bf16.mxu0 %v324
    %519 = vmatmul.mubr.bf16.gmra.mxu0 %v323
    %v520 = vpop.f32.mrf.mxu0
    %v521 = vadd.f32 %v372, %v520
    %v522 = vpop.f32.mrf.mxu0
    %v523 = vpop.f32.mrf.mxu0
    %v524 = vadd.f32 %v372, %v523
    %v525 = vpop.f32.mrf.mxu0
    %526 = vmatprep.mubr.bf16.mxu0 %v326
    %527 = vmatmul.mubr.bf16.gmra.mxu0 %v325
    %v528 = vpop.f32.mrf.mxu0
    %v529 = vadd.f32 %v372, %v528
    %v530 = vpop.f32.mrf.mxu0
    %v531 = vpop.f32.mrf.mxu0
    %v532 = vadd.f32 %v372, %v531
    %v533 = vpop.f32.mrf.mxu0
    %534 = vmatprep.mubr.bf16.mxu0 %v328
    %535 = vmatmul.mubr.bf16.gmra.mxu0 %v327
    %v536 = vpop.f32.mrf.mxu0
    %v537 = vadd.f32 %v372, %v536
    %v538 = vpop.f32.mrf.mxu0
    %v539 = vpop.f32.mrf.mxu0
    %v540 = vadd.f32 %v372, %v539
    %v541 = vpop.f32.mrf.mxu0
    %542 = vmatprep.mubr.bf16.mxu0 %v330
    %543 = vmatmul.mubr.bf16.gmra.mxu0 %v329
    %v544 = vpop.f32.mrf.mxu0
    %v545 = vadd.f32 %v372, %v544
    %v546 = vpop.f32.mrf.mxu0
    %v547 = vpop.f32.mrf.mxu0
    %v548 = vadd.f32 %v372, %v547
    %v549 = vpop.f32.mrf.mxu0
    %550 = vmatprep.mubr.bf16.mxu0 %v332
    %551 = vmatmul.mubr.bf16.gmra.mxu0 %v331
    %v552 = vpop.f32.mrf.mxu0
    %v553 = vadd.f32 %v372, %v552
    %v554 = vpop.f32.mrf.mxu0
    %v555 = vpop.f32.mrf.mxu0
    %v556 = vadd.f32 %v372, %v555
    %v557 = vpop.f32.mrf.mxu0
    %558 = vmatprep.mubr.bf16.mxu0 %v334
    %559 = vmatmul.mubr.bf16.gmra.mxu0 %v333
    %v560 = vpop.f32.mrf.mxu0
    %v561 = vadd.f32 %v372, %v560
    %v562 = vpop.f32.mrf.mxu0
    %v563 = vpop.f32.mrf.mxu0
    %v564 = vadd.f32 %v372, %v563
    %v565 = vpop.f32.mrf.mxu0
    %566 = vdwg.mxu0
    %v567 = vpack.c.bf16 %v508, %v505
    %v568 = vpack.c.bf16 %v516, %v513
    %v569 = vpack.c.bf16 %v524, %v521
    %v570 = vpack.c.bf16 %v532, %v529
    %v571 = vpack.c.bf16 %v540, %v537
    %v572 = vpack.c.bf16 %v548, %v545
    %v573 = vpack.c.bf16 %v556, %v553
    %v574 = vpack.c.bf16 %v564, %v561
    %v575 = vld [vmem:[#allocation4] sm:$0xff]
    %v576 = vld [vmem:[#allocation4 + $0x8] sm:$0xff]
    %v577 = vld [vmem:[#allocation4 + $0x10] sm:$0xff]
    %v578 = vld [vmem:[#allocation4 + $0x18] sm:$0xff]
    %v579 = vld [vmem:[#allocation4 + $0x20] sm:$0xff]
    %v580 = vld [vmem:[#allocation4 + $0x28] sm:$0xff]
    %v581 = vld [vmem:[#allocation4 + $0x30] sm:$0xff]
    %v582 = vld [vmem:[#allocation4 + $0x38] sm:$0xff]
    %v583 = vld [vmem:[#allocation4 + $0x40] sm:$0xff]
    %v584 = vld [vmem:[#allocation4 + $0x48] sm:$0xff]
    %v585 = vld [vmem:[#allocation4 + $0x50] sm:$0xff]
    %v586 = vld [vmem:[#allocation4 + $0x58] sm:$0xff]
    %v587 = vld [vmem:[#allocation4 + $0x60] sm:$0xff]
    %v588 = vld [vmem:[#allocation4 + $0x68] sm:$0xff]
    %v589 = vld [vmem:[#allocation4 + $0x70] sm:$0xff]
    %v590 = vld [vmem:[#allocation4 + $0x78] sm:$0xff]
    %v591 = vld [vmem:[%s6] sm:$0x3]
    %v593 = vlaneseq
    %v594 = vshrl.u32 %v593, 7
    %v595 = vsub.s32 0, %v594
    %v596 = vrot.slane %v591, %v595
    %v597 = vlaneseq
    %v598 = vshrl.u32 %v597, 7
    %v599 = vsub.s32 1, %v598
    %v600 = vrot.slane %v591, %v599
    %v619 = vunpack.c.l.b16 %v575
    %v620 = vunpack.c.h.b16 %v575
    %v621 = vunpack.c.l.b16 %v576
    %v622 = vunpack.c.h.b16 %v576
    %v623 = vunpack.c.l.b16 %v577
    %v624 = vunpack.c.h.b16 %v577
    %v625 = vunpack.c.l.b16 %v578
    %v626 = vunpack.c.h.b16 %v578
    %v627 = vunpack.c.l.b16 %v579
    %v628 = vunpack.c.h.b16 %v579
    %v629 = vunpack.c.l.b16 %v580
    %v630 = vunpack.c.h.b16 %v580
    %v631 = vunpack.c.l.b16 %v581
    %v632 = vunpack.c.h.b16 %v581
    %v633 = vunpack.c.l.b16 %v582
    %v634 = vunpack.c.h.b16 %v582
    %v635 = vunpack.c.l.b16 %v583
    %v636 = vunpack.c.h.b16 %v583
    %v637 = vunpack.c.l.b16 %v584
    %v638 = vunpack.c.h.b16 %v584
    %v639 = vunpack.c.l.b16 %v585
    %v640 = vunpack.c.h.b16 %v585
    %v641 = vunpack.c.l.b16 %v586
    %v642 = vunpack.c.h.b16 %v586
    %v643 = vunpack.c.l.b16 %v587
    %v644 = vunpack.c.h.b16 %v587
    %v645 = vunpack.c.l.b16 %v588
    %v646 = vunpack.c.h.b16 %v588
    %v647 = vunpack.c.l.b16 %v589
    %v648 = vunpack.c.h.b16 %v589
    %v649 = vunpack.c.l.b16 %v590
    %v650 = vunpack.c.h.b16 %v590
    %v651 = vpack.c.b16 %v621, %v619
    %v652 = vpack.c.b16 %v622, %v620
    %v653 = vpack.c.b16 %v625, %v623
    %v654 = vpack.c.b16 %v626, %v624
    %v655 = vpack.c.b16 %v629, %v627
    %v656 = vpack.c.b16 %v630, %v628
    %v657 = vpack.c.b16 %v633, %v631
    %v658 = vpack.c.b16 %v634, %v632
    %v659 = vpack.c.b16 %v637, %v635
    %v660 = vpack.c.b16 %v638, %v636
    %v661 = vpack.c.b16 %v641, %v639
    %v662 = vpack.c.b16 %v642, %v640
    %v663 = vpack.c.b16 %v645, %v643
    %v664 = vpack.c.b16 %v646, %v644
    %v665 = vpack.c.b16 %v649, %v647
    %v666 = vpack.c.b16 %v650, %v648
    %683 = vmatprep.subr.bf16.mxu0 %v666
    %684 = vmatpush1.bf16.msra.mxu0 %v665
    %685 = vmatprep.subr.bf16.mxu0 %v664
    %686 = vmatpush1.bf16.msra.mxu0 %v663
    %687 = vmatprep.subr.bf16.mxu0 %v662
    %688 = vmatpush1.bf16.msra.mxu0 %v661
    %689 = vmatprep.subr.bf16.mxu0 %v660
    %690 = vmatpush1.bf16.msra.mxu0 %v659
    %691 = vmatprep.subr.bf16.mxu0 %v658
    %692 = vmatpush1.bf16.msra.mxu0 %v657
    %693 = vmatprep.subr.bf16.mxu0 %v656
    %694 = vmatpush1.bf16.msra.mxu0 %v655
    %695 = vmatprep.subr.bf16.mxu0 %v654
    %696 = vmatpush1.bf16.msra.mxu0 %v653
    %697 = vmatprep.subr.bf16.mxu0 %v652
    %698 = vmatpush1.bf16.msra.mxu0 %v651
    %699 = vmatprep.subr.bf16.mxu0 0
    %700 = vmatpush2.bf16.msra.mxu0 0
    %701 = vmatprep.subr.bf16.mxu0 0
    %702 = vmatpush2.bf16.msra.mxu0 0
    %703 = vmatprep.subr.bf16.mxu0 0
    %704 = vmatpush2.bf16.msra.mxu0 0
    %705 = vmatprep.subr.bf16.mxu0 0
    %706 = vmatpush2.bf16.msra.mxu0 0
    %707 = vmatprep.subr.bf16.mxu0 0
    %708 = vmatpush2.bf16.msra.mxu0 0
    %709 = vmatprep.subr.bf16.mxu0 0
    %710 = vmatpush2.bf16.msra.mxu0 0
    %711 = vmatprep.subr.bf16.mxu0 0
    %712 = vmatpush2.bf16.msra.mxu0 0
    %713 = vmatprep.subr.bf16.mxu0 0
    %714 = vmatpush2.bf16.msra.mxu0 0
    %715 = vmatprep.mubr.bf16.mxu0 0
    %716 = vmatmul.mubr.bf16.gmra.mxu0 %v567
    %v717 = vpop.f32.mrf.mxu0
    %v718 = vadd.f32 %v596, %v717
    %v719 = vpop.f32.mrf.mxu0
    %v720 = vadd.f32 %v600, %v719
    %v721 = vpop.f32.mrf.mxu0
    %v722 = vadd.f32 %v596, %v721
    %v723 = vpop.f32.mrf.mxu0
    %v724 = vadd.f32 %v600, %v723
    %725 = vmatprep.mubr.bf16.mxu0 0
    %726 = vmatmul.mubr.bf16.gmra.mxu0 %v568
    %v727 = vpop.f32.mrf.mxu0
    %v728 = vadd.f32 %v596, %v727
    %v729 = vpop.f32.mrf.mxu0
    %v730 = vadd.f32 %v600, %v729
    %v731 = vpop.f32.mrf.mxu0
    %v732 = vadd.f32 %v596, %v731
    %v733 = vpop.f32.mrf.mxu0
    %v734 = vadd.f32 %v600, %v733
    %735 = vmatprep.mubr.bf16.mxu0 0
    %736 = vmatmul.mubr.bf16.gmra.mxu0 %v569
    %v737 = vpop.f32.mrf.mxu0
    %v738 = vadd.f32 %v596, %v737
    %v739 = vpop.f32.mrf.mxu0
    %v740 = vadd.f32 %v600, %v739
    %v741 = vpop.f32.mrf.mxu0
    %v742 = vadd.f32 %v596, %v741
    %v743 = vpop.f32.mrf.mxu0
    %v744 = vadd.f32 %v600, %v743
    %745 = vmatprep.mubr.bf16.mxu0 0
    %746 = vmatmul.mubr.bf16.gmra.mxu0 %v570
    %v747 = vpop.f32.mrf.mxu0
    %v748 = vadd.f32 %v596, %v747
    %v749 = vpop.f32.mrf.mxu0
    %v750 = vadd.f32 %v600, %v749
    %v751 = vpop.f32.mrf.mxu0
    %v752 = vadd.f32 %v596, %v751
    %v753 = vpop.f32.mrf.mxu0
    %v754 = vadd.f32 %v600, %v753
    %755 = vmatprep.mubr.bf16.mxu0 0
    %756 = vmatmul.mubr.bf16.gmra.mxu0 %v571
    %v757 = vpop.f32.mrf.mxu0
    %v758 = vadd.f32 %v596, %v757
    %v759 = vpop.f32.mrf.mxu0
    %v760 = vadd.f32 %v600, %v759
    %v761 = vpop.f32.mrf.mxu0
    %v762 = vadd.f32 %v596, %v761
    %v763 = vpop.f32.mrf.mxu0
    %v764 = vadd.f32 %v600, %v763
    %765 = vmatprep.mubr.bf16.mxu0 0
    %766 = vmatmul.mubr.bf16.gmra.mxu0 %v572
    %v767 = vpop.f32.mrf.mxu0
    %v768 = vadd.f32 %v596, %v767
    %v769 = vpop.f32.mrf.mxu0
    %v770 = vadd.f32 %v600, %v769
    %v771 = vpop.f32.mrf.mxu0
    %v772 = vadd.f32 %v596, %v771
    %v773 = vpop.f32.mrf.mxu0
    %v774 = vadd.f32 %v600, %v773
    %775 = vmatprep.mubr.bf16.mxu0 0
    %776 = vmatmul.mubr.bf16.gmra.mxu0 %v573
    %v777 = vpop.f32.mrf.mxu0
    %v778 = vadd.f32 %v596, %v777
    %v779 = vpop.f32.mrf.mxu0
    %v780 = vadd.f32 %v600, %v779
    %v781 = vpop.f32.mrf.mxu0
    %v782 = vadd.f32 %v596, %v781
    %v783 = vpop.f32.mrf.mxu0
    %v784 = vadd.f32 %v600, %v783
    %785 = vmatprep.mubr.bf16.mxu0 0
    %786 = vmatmul.mubr.bf16.gmra.mxu0 %v574
    %v787 = vpop.f32.mrf.mxu0
    %v788 = vadd.f32 %v596, %v787
    %v789 = vpop.f32.mrf.mxu0
    %v790 = vadd.f32 %v600, %v789
    %v791 = vpop.f32.mrf.mxu0
    %v792 = vadd.f32 %v596, %v791
    %v793 = vpop.f32.mrf.mxu0
    %v794 = vadd.f32 %v600, %v793
    %795 = vdwg.mxu0
    %v796 = vpack.c.bf16 %v722, %v718
    %v797 = vpack.c.bf16 %v724, %v720
    %v798 = vpack.c.bf16 %v732, %v728
    %v799 = vpack.c.bf16 %v734, %v730
    %v800 = vpack.c.bf16 %v742, %v738
    %v801 = vpack.c.bf16 %v744, %v740
    %v802 = vpack.c.bf16 %v752, %v748
    %v803 = vpack.c.bf16 %v754, %v750
    %v804 = vpack.c.bf16 %v762, %v758
    %v805 = vpack.c.bf16 %v764, %v760
    %v806 = vpack.c.bf16 %v772, %v768
    %v807 = vpack.c.bf16 %v774, %v770
    %v808 = vpack.c.bf16 %v782, %v778
    %v809 = vpack.c.bf16 %v784, %v780
    %v810 = vpack.c.bf16 %v792, %v788
    %v811 = vpack.c.bf16 %v794, %v790
    %v812 = vld [vmem:[#allocation6] sm:$0xf]
    %v813 = vld [vmem:[#allocation6 + $0x4] sm:$0xf]
    %v814 = vld [vmem:[#allocation6 + $0x8] sm:$0xf]
    %v815 = vld [vmem:[#allocation6 + $0xc] sm:$0xf]
    %v816 = vld [vmem:[#allocation6 + $0x10] sm:$0xf]
    %v817 = vld [vmem:[#allocation6 + $0x14] sm:$0xf]
    %v818 = vld [vmem:[#allocation6 + $0x18] sm:$0xf]
    %v819 = vld [vmem:[#allocation6 + $0x1c] sm:$0xf]
    %v820 = vld [vmem:[#allocation6 + $0x20] sm:$0xf]
    %v821 = vld [vmem:[#allocation6 + $0x24] sm:$0xf]
    %v822 = vld [vmem:[#allocation6 + $0x28] sm:$0xf]
    %v823 = vld [vmem:[#allocation6 + $0x2c] sm:$0xf]
    %v824 = vld [vmem:[#allocation6 + $0x30] sm:$0xf]
    %v825 = vld [vmem:[#allocation6 + $0x34] sm:$0xf]
    %v826 = vld [vmem:[#allocation6 + $0x38] sm:$0xf]
    %v827 = vld [vmem:[#allocation6 + $0x3c] sm:$0xf]
    %v828 = vld [vmem:[#allocation6 + $0x40] sm:$0xf]
    %v829 = vld [vmem:[#allocation6 + $0x44] sm:$0xf]
    %v830 = vld [vmem:[#allocation6 + $0x48] sm:$0xf]
    %v831 = vld [vmem:[#allocation6 + $0x4c] sm:$0xf]
    %v832 = vld [vmem:[#allocation6 + $0x50] sm:$0xf]
    %v833 = vld [vmem:[#allocation6 + $0x54] sm:$0xf]
    %v834 = vld [vmem:[#allocation6 + $0x58] sm:$0xf]
    %v835 = vld [vmem:[#allocation6 + $0x5c] sm:$0xf]
    %v836 = vld [vmem:[#allocation6 + $0x60] sm:$0xf]
    %v837 = vld [vmem:[#allocation6 + $0x64] sm:$0xf]
    %v838 = vld [vmem:[#allocation6 + $0x68] sm:$0xf]
    %v839 = vld [vmem:[#allocation6 + $0x6c] sm:$0xf]
    %v840 = vld [vmem:[#allocation6 + $0x70] sm:$0xf]
    %v841 = vld [vmem:[#allocation6 + $0x74] sm:$0xf]
    %v842 = vld [vmem:[#allocation6 + $0x78] sm:$0xf]
    %v843 = vld [vmem:[#allocation6 + $0x7c] sm:$0xf]
    %v844 = vld [vmem:[%s8] sm:$0x1]
    %v846 = vlaneseq
    %v847 = vshrl.u32 %v846, 7
    %v848 = vsub.s32 0, %v847
    %v849 = vrot.slane %v844, %v848
    %v883 = vunpack.c.l.b16 %v812
    %v884 = vunpack.c.l.b16 %v813
    %v885 = vunpack.c.l.b16 %v814
    %v886 = vunpack.c.l.b16 %v815
    %v887 = vunpack.c.l.b16 %v816
    %v888 = vunpack.c.l.b16 %v817
    %v889 = vunpack.c.l.b16 %v818
    %v890 = vunpack.c.l.b16 %v819
    %v891 = vunpack.c.l.b16 %v820
    %v892 = vunpack.c.l.b16 %v821
    %v893 = vunpack.c.l.b16 %v822
    %v894 = vunpack.c.l.b16 %v823
    %v895 = vunpack.c.l.b16 %v824
    %v896 = vunpack.c.l.b16 %v825
    %v897 = vunpack.c.l.b16 %v826
    %v898 = vunpack.c.l.b16 %v827
    %v899 = vunpack.c.l.b16 %v828
    %v900 = vunpack.c.l.b16 %v829
    %v901 = vunpack.c.l.b16 %v830
    %v902 = vunpack.c.l.b16 %v831
    %v903 = vunpack.c.l.b16 %v832
    %v904 = vunpack.c.l.b16 %v833
    %v905 = vunpack.c.l.b16 %v834
    %v906 = vunpack.c.l.b16 %v835
    %v907 = vunpack.c.l.b16 %v836
    %v908 = vunpack.c.l.b16 %v837
    %v909 = vunpack.c.l.b16 %v838
    %v910 = vunpack.c.l.b16 %v839
    %v911 = vunpack.c.l.b16 %v840
    %v912 = vunpack.c.l.b16 %v841
    %v913 = vunpack.c.l.b16 %v842
    %v914 = vunpack.c.l.b16 %v843
    %v915 = vpack.c.b16 %v884, %v883
    %v916 = vpack.c.b16 %v886, %v885
    %v917 = vpack.c.b16 %v888, %v887
    %v918 = vpack.c.b16 %v890, %v889
    %v919 = vpack.c.b16 %v892, %v891
    %v920 = vpack.c.b16 %v894, %v893
    %v921 = vpack.c.b16 %v896, %v895
    %v922 = vpack.c.b16 %v898, %v897
    %v923 = vpack.c.b16 %v900, %v899
    %v924 = vpack.c.b16 %v902, %v901
    %v925 = vpack.c.b16 %v904, %v903
    %v926 = vpack.c.b16 %v906, %v905
    %v927 = vpack.c.b16 %v908, %v907
    %v928 = vpack.c.b16 %v910, %v909
    %v929 = vpack.c.b16 %v912, %v911
    %v930 = vpack.c.b16 %v914, %v913
    %947 = vmatprep.subr.bf16.mxu0 0
    %948 = vmatpush1.bf16.msra.mxu0 %v922
    %949 = vmatprep.subr.bf16.mxu0 0
    %950 = vmatpush1.bf16.msra.mxu0 %v921
    %951 = vmatprep.subr.bf16.mxu0 0
    %952 = vmatpush1.bf16.msra.mxu0 %v920
    %953 = vmatprep.subr.bf16.mxu0 0
    %954 = vmatpush1.bf16.msra.mxu0 %v919
    %955 = vmatprep.subr.bf16.mxu0 0
    %956 = vmatpush1.bf16.msra.mxu0 %v918
    %957 = vmatprep.subr.bf16.mxu0 0
    %958 = vmatpush1.bf16.msra.mxu0 %v917
    %959 = vmatprep.subr.bf16.mxu0 0
    %960 = vmatpush1.bf16.msra.mxu0 %v916
    %961 = vmatprep.subr.bf16.mxu0 0
    %962 = vmatpush1.bf16.msra.mxu0 %v915
    %963 = vmatprep.subr.bf16.mxu0 0
    %964 = vmatpush2.bf16.msra.mxu0 %v930
    %965 = vmatprep.subr.bf16.mxu0 0
    %966 = vmatpush2.bf16.msra.mxu0 %v929
    %967 = vmatprep.subr.bf16.mxu0 0
    %968 = vmatpush2.bf16.msra.mxu0 %v928
    %969 = vmatprep.subr.bf16.mxu0 0
    %970 = vmatpush2.bf16.msra.mxu0 %v927
    %971 = vmatprep.subr.bf16.mxu0 0
    %972 = vmatpush2.bf16.msra.mxu0 %v926
    %973 = vmatprep.subr.bf16.mxu0 0
    %974 = vmatpush2.bf16.msra.mxu0 %v925
    %975 = vmatprep.subr.bf16.mxu0 0
    %976 = vmatpush2.bf16.msra.mxu0 %v924
    %977 = vmatprep.subr.bf16.mxu0 0
    %978 = vmatpush2.bf16.msra.mxu0 %v923
    %979 = vmatprep.mubr.bf16.mxu0 %v797
    %980 = vmatmul.mubr.bf16.gmra.mxu0 %v796
    %v981 = vpop.f32.mrf.mxu0
    %v982 = vadd.f32 %v849, %v981
    %v983 = vpop.f32.mrf.mxu0
    %v984 = vpop.f32.mrf.mxu0
    %v985 = vadd.f32 %v849, %v984
    %v986 = vpop.f32.mrf.mxu0
    %987 = vmatprep.mubr.bf16.mxu0 %v799
    %988 = vmatmul.mubr.bf16.gmra.mxu0 %v798
    %v989 = vpop.f32.mrf.mxu0
    %v990 = vadd.f32 %v849, %v989
    %v991 = vpop.f32.mrf.mxu0
    %v992 = vpop.f32.mrf.mxu0
    %v993 = vadd.f32 %v849, %v992
    %v994 = vpop.f32.mrf.mxu0
    %995 = vmatprep.mubr.bf16.mxu0 %v801
    %996 = vmatmul.mubr.bf16.gmra.mxu0 %v800
    %v997 = vpop.f32.mrf.mxu0
    %v998 = vadd.f32 %v849, %v997
    %v999 = vpop.f32.mrf.mxu0
    %v1000 = vpop.f32.mrf.mxu0
    %v1001 = vadd.f32 %v849, %v1000
    %v1002 = vpop.f32.mrf.mxu0
    %1003 = vmatprep.mubr.bf16.mxu0 %v803
    %1004 = vmatmul.mubr.bf16.gmra.mxu0 %v802
    %v1005 = vpop.f32.mrf.mxu0
    %v1006 = vadd.f32 %v849, %v1005
    %v1007 = vpop.f32.mrf.mxu0
    %v1008 = vpop.f32.mrf.mxu0
    %v1009 = vadd.f32 %v849, %v1008
    %v1010 = vpop.f32.mrf.mxu0
    %1011 = vmatprep.mubr.bf16.mxu0 %v805
    %1012 = vmatmul.mubr.bf16.gmra.mxu0 %v804
    %v1013 = vpop.f32.mrf.mxu0
    %v1014 = vadd.f32 %v849, %v1013
    %v1015 = vpop.f32.mrf.mxu0
    %v1016 = vpop.f32.mrf.mxu0
    %v1017 = vadd.f32 %v849, %v1016
    %v1018 = vpop.f32.mrf.mxu0
    %1019 = vmatprep.mubr.bf16.mxu0 %v807
    %1020 = vmatmul.mubr.bf16.gmra.mxu0 %v806
    %v1021 = vpop.f32.mrf.mxu0
    %v1022 = vadd.f32 %v849, %v1021
    %v1023 = vpop.f32.mrf.mxu0
    %v1024 = vpop.f32.mrf.mxu0
    %v1025 = vadd.f32 %v849, %v1024
    %v1026 = vpop.f32.mrf.mxu0
    %1027 = vmatprep.mubr.bf16.mxu0 %v809
    %1028 = vmatmul.mubr.bf16.gmra.mxu0 %v808
    %v1029 = vpop.f32.mrf.mxu0
    %v1030 = vadd.f32 %v849, %v1029
    %v1031 = vpop.f32.mrf.mxu0
    %v1032 = vpop.f32.mrf.mxu0
    %v1033 = vadd.f32 %v849, %v1032
    %v1034 = vpop.f32.mrf.mxu0
    %1035 = vmatprep.mubr.bf16.mxu0 %v811
    %1036 = vmatmul.mubr.bf16.gmra.mxu0 %v810
    %v1037 = vpop.f32.mrf.mxu0
    %v1038 = vadd.f32 %v849, %v1037
    %v1039 = vpop.f32.mrf.mxu0
    %v1040 = vpop.f32.mrf.mxu0
    %v1041 = vadd.f32 %v849, %v1040
    %v1042 = vpop.f32.mrf.mxu0
    %1043 = vdwg.mxu0
    %1044 = vst [vmem:[%s9] sm:$0xff] %v982
    %1045 = vst [vmem:[%s9 + $0x8] sm:$0xff] %v985
    %1046 = vst [vmem:[%s9 + $0x10] sm:$0xff] %v990
    %1047 = vst [vmem:[%s9 + $0x18] sm:$0xff] %v993
    %1048 = vst [vmem:[%s9 + $0x20] sm:$0xff] %v998
    %1049 = vst [vmem:[%s9 + $0x28] sm:$0xff] %v1001
    %1050 = vst [vmem:[%s9 + $0x30] sm:$0xff] %v1006
    %1051 = vst [vmem:[%s9 + $0x38] sm:$0xff] %v1009
    %1052 = vst [vmem:[%s9 + $0x40] sm:$0xff] %v1014
    %1053 = vst [vmem:[%s9 + $0x48] sm:$0xff] %v1017
    %1054 = vst [vmem:[%s9 + $0x50] sm:$0xff] %v1022
    %1055 = vst [vmem:[%s9 + $0x58] sm:$0xff] %v1025
    %1056 = vst [vmem:[%s9 + $0x60] sm:$0xff] %v1030
    %1057 = vst [vmem:[%s9 + $0x68] sm:$0xff] %v1033
    %1058 = vst [vmem:[%s9 + $0x70] sm:$0xff] %v1038
    %1059 = vst [vmem:[%s9 + $0x78] sm:$0xff] %v1041
    // Predicated region
    $region50: #{_forward_impl.1} parent=1 // pred_check
      _
    $region51: #{_forward_impl.1} parent=1 // pred_check_branch
      %1061 = sbr.rel (0) target = $region53
    $region52: #{_forward_impl.1} parent=1 // pred_region
      _
    $region53: #{_forward_impl.1} parent=1 // pred_fallthru
      _
    // Predicated region
    $region54: #{_forward_impl.1} parent=1 // pred_check
      _
    $region55: #{_forward_impl.1} parent=1 // pred_check_branch
      %1063 = sbr.rel (0) target = $region57
    $region56: #{_forward_impl.1} parent=1 // pred_region
      _
    $region57: #{_forward_impl.1} parent=1 // pred_fallthru
      _
    %1064 = vsyncpa [#allocation3], 1
    %1065 = vsyncpa [#allocation5], 1

</llo_original>
